<compile_context>
chip_gen: v5e
topology: v5e:2x2
jax: 0.10.0
libtpu: 0.0.40
codegen_flags: <defaults>
</compile_context>

<pallas_src>
import functools

import jax
import jax.numpy as jnp
import numpy as np
from jax.experimental import pallas as pl
from jax.experimental.pallas import tpu as pltpu

_LANE = 128
_MIB = 1024 * 1024


def _round_up(x: int, m: int) -> int:
    return ((x + m - 1) // m) * m


def _sublane_multiple(dtype) -> int:
    return {4: 8, 2: 16, 1: 32}.get(jnp.dtype(dtype).itemsize, 8)


def _vmem_capacity_bytes() -> int:
    # Physical VMEM so tile budgets adapt to v5e/v6e (128 MiB) vs v7x (64 MiB);
    # fall back to the most conservative (v7x) figure.
    try:
        cap = int(pltpu.get_tpu_info().vmem_capacity_bytes)
        if cap > 0:
            return cap
    except Exception:
        pass
    return 64 * _MIB


def _partmap2joint_kernel(idx_ref, part_ref, out_ref, *, cg_in, cg_out, gw):
    """(tm, G*w) part tile -> (tm, G*7) joint tile via one lane gather."""
    p = part_ref[...]                                    # (tm, cg_in)
    tm = p.shape[0]
    if gw > cg_in:
        # Widen the gather source so source/index widths match (lowering
        # requirement). VMEM-only traffic, hidden under the HBM-bound DMA.
        p = jnp.concatenate(
            [p, jnp.zeros((tm, gw - cg_in), dtype=p.dtype)], axis=-1)
    # Resident precomputed indices: only a cheap sublane broadcast per step.
    idx = jnp.broadcast_to(idx_ref[...], (tm, gw))
    gathered = jnp.take_along_axis(p, idx, axis=-1, mode="promise_in_bounds")
    out_ref[...] = gathered[:, :cg_out]


def partmap2joint(part: jax.Array, *, block_bytes: int | None = None) -> jax.Array:
    """JAX/Pallas equivalent of Partmap2joint.forward.

    part: (N, d, T, w) with w >= 3.  Returns (N, d, T, 7), same dtype, with
    out[..., j] = part[..., j // 3].
    """
    N, d, T, w = part.shape
    assert w >= 3, "Partmap2joint expects at least 3 part maps in the last dim"
    dtype = part.dtype
    itemsize = jnp.dtype(dtype).itemsize
    sub = _sublane_multiple(dtype)
    # TODO(synk): sub-32-bit dtypes (bf16/fp16/int8) may not lower through the
    # dynamic lane gather; for those, switch to the constant 0/1 expansion
    # matrix on the MXU (resident (G*w, G*7) input, precision=HIGHEST).

    R = N * d                       # row (sublane) axis
    G = min(T, _LANE)               # frames per lane group
    n_tg = pl.cdiv(T, G)            # lane-group grid extent
    cg_in, cg_out = G * w, G * 7    # per-group lane widths (in / out)
    c_in, c_out = T * w, T * 7
    gw = _round_up(max(cg_in, cg_out), _LANE)   # common gather width
    # TODO(synk): for T > 18 the gather spans several output vregs; if Mosaic
    # rejects that shape, fall back to the 0/1-matrix MXU path noted above.

    flat = part.reshape(R, c_in)    # free view, no copy

    # ---- row-tile sizing (per-generation VMEM budget) -----------------------
    vmem_cap = _vmem_capacity_bytes()
    if block_bytes is None:
        # ~16 MiB tiles on 128 MiB VMEM parts (v5e/v6e), ~10.7 MiB on v7x's
        # 64 MiB, so double-buffered in+out plus intermediates fit the limit.
        block_bytes = min(16 * _MIB, vmem_cap // 6)

    cin_pad = _round_up(cg_in, _LANE)
    cout_pad = _round_up(cg_out, _LANE)
    row_bytes = (cin_pad + cout_pad) * itemsize
    tm = max(sub, (block_bytes // row_bytes) // sub * sub)
    if tm >= R:
        tm = R                      # single row block (full-dim escape)
    n_rb = pl.cdiv(R, tm)
    if R >= 4 * sub:
        # >= 4 (even) row blocks: >= 2 blocks per v7x TensorCore so the
        # parallel axis load-balances across both cores and the pipeline has
        # something to overlap.
        n_rb = max(n_rb, 4)
        n_rb += n_rb % 2
        tm = _round_up(pl.cdiv(R, n_rb), sub)
        n_rb = pl.cdiv(R, tm)

    # ---- resident gather-index row (hoisted out of the kernel) --------------
    lanes = np.arange(gw)
    src = (lanes // 7) * w + (lanes % 7) // 3      # joint j reads part j // 3
    src = np.minimum(src, gw - 1).astype(np.int32)
    idx = jnp.asarray(src.reshape(1, gw))

    # ---- explicit scoped-VMEM limit ------------------------------------------
    tile_bytes = _round_up(tm, sub) * (cin_pad + cout_pad) * itemsize
    vmem_limit = int(min(max(3 * tile_bytes + 16 * _MIB, 32 * _MIB),
                         (vmem_cap * 9) // 10))

    kernel = functools.partial(_partmap2joint_kernel,
                               cg_in=cg_in, cg_out=cg_out, gw=gw)

    out_flat = pl.pallas_call(
        kernel,
        out_shape=jax.ShapeDtypeStruct((R, c_out), dtype),
        grid=(n_rb, n_tg),
        in_specs=[
            pl.BlockSpec((1, gw), lambda i, j: (0, 0)),      # resident indices
            pl.BlockSpec((tm, cg_in), lambda i, j: (i, j)),  # part tile
        ],
        out_specs=pl.BlockSpec((tm, cg_out), lambda i, j: (i, j)),
        compiler_params=pltpu.CompilerParams(
            dimension_semantics=("parallel", "parallel"),
            vmem_limit_bytes=vmem_limit),
        cost_estimate=pl.CostEstimate(
            flops=0, transcendentals=0,
            bytes_accessed=R * (c_in + c_out) * itemsize),
    )(idx, flat)

    return out_flat.reshape(N, d, T, 7)


def partmap2joint_ref(part: jax.Array) -> jax.Array:
    """Pure-JAX reference mirroring the PyTorch forward."""
    src = jnp.array([0, 0, 0, 1, 1, 1, 2], dtype=jnp.int32)
    return jnp.take(part, src, axis=-1)


if __name__ == "__main__":
    key = jax.random.PRNGKey(0)
    k1, k2 = jax.random.split(key)

    # Shapes consistent with the module: N batch, d channels, T frames,
    # w part maps (head / body / tail).
    N, d, T, w = 2, 4, 16, 3
    part = jax.random.normal(k1, (N, d, T, w), dtype=jnp.float32)

    out = jax.block_until_ready(partmap2joint(part))
    ref = partmap2joint_ref(part)
    assert out.shape == (N, d, T, 7), out.shape
    assert out.dtype == part.dtype
    assert jnp.array_equal(out, ref), "mismatch vs reference"

    # Second shape: extra (unused) part maps and a row count that is not a
    # multiple of the sublane tile, exercising the full-dim row block path.
    part2 = jax.random.normal(k2, (3, 5, 16, 4), dtype=jnp.float32)
    out2 = jax.block_until_ready(partmap2joint(part2))
    assert jnp.array_equal(out2, partmap2joint_ref(part2)), "mismatch (shape 2)"

    print("KERNEL_OK")
</pallas_src>

<mosaic_0001>
module attributes {stable_mosaic.version = 11 : i64} {
  func.func @_partmap2joint_kernel(%arg0: i32, %arg1: i32, %arg2: memref<1x128xi32, #tpu.memory_space<vmem>>, %arg3: memref<8x48xf32, #tpu.memory_space<vmem>>, %arg4: memref<8x112xf32, #tpu.memory_space<vmem>>) attributes {dimension_semantics = [#tpu.dimension_semantics<parallel>, #tpu.dimension_semantics<parallel>], iteration_bounds = array<i64: 1, 1>, scalar_prefetch = 0 : i64, scratch_operands = 0 : i64, tpu.core_type = #tpu.core_type<tc>, window_params = [{pipeline_mode = #tpu.pipeline_mode<synchronous>, transform_indices = @transform_0, window_bounds = array<i64: 1, 128>}, {transform_indices = @transform_1, window_bounds = array<i64: 8, 48>}, {transform_indices = @transform_2, window_bounds = array<i64: 8, 112>}]} {
    %c0 = arith.constant 0 : index
    %c0_0 = arith.constant 0 : index
    %0 = vector.load %arg3[%c0, %c0_0] : memref<8x48xf32, #tpu.memory_space<vmem>>, vector<8x48xf32>
    %cst = arith.constant 0.000000e+00 : f32
    %1 = vector.broadcast %cst : f32 to vector<8x80xf32>
    %2 = tpu.concatenate %0, %1 in 1 : vector<8x48xf32>, vector<8x80xf32> -> vector<8x128xf32>
    %c0_1 = arith.constant 0 : index
    %c0_2 = arith.constant 0 : index
    %3 = vector.load %arg2[%c0_1, %c0_2] : memref<1x128xi32, #tpu.memory_space<vmem>>, vector<1x128xi32>
    %4 = vector.shape_cast %3 : vector<1x128xi32> to vector<1x128xi32>
    %5 = vector.broadcast %4 : vector<1x128xi32> to vector<8x128xi32>
    %6 = vector.shape_cast %5 : vector<8x128xi32> to vector<8x128x1xi32>
    %7 = vector.shape_cast %6 : vector<8x128x1xi32> to vector<8x128xi32>
    %8 = tpu.dynamic_gather %2[%7] in [1] : vector<8x128xf32>, vector<8x128xi32> -> vector<8x128xf32>
    %9 = vector.extract_strided_slice %8 {offsets = [0, 0], sizes = [8, 112], strides = [1, 1]} : vector<8x128xf32> to vector<8x112xf32>
    %c0_3 = arith.constant 0 : index
    %c0_4 = arith.constant 0 : index
    %10 = vector.load %arg4[%c0_3, %c0_4] : memref<8x112xf32, #tpu.memory_space<vmem>>, vector<8x112xf32>
    tpu.vector_store %arg4[%c0_3, %c0_4], %9 {strides = array<i32>} : memref<8x112xf32, #tpu.memory_space<vmem>>, vector<8x112xf32>,
    return
  }
  func.func @transform_0(%arg0: i32, %arg1: i32) -> (i32, i32) {
    %c0_i32 = arith.constant 0 : i32
    %c0_i32_0 = arith.constant 0 : i32
    %c0_i32_1 = arith.constant 0 : i32
    return %c0_i32, %c0_i32_0 : i32, i32
  }
  func.func @transform_1(%arg0: i32, %arg1: i32) -> (i32, i32) {
    %c0_i32 = arith.constant 0 : i32
    return %arg0, %arg1 : i32, i32
  }
  func.func @transform_2(%arg0: i32, %arg1: i32) -> (i32, i32) {
    %c0_i32 = arith.constant 0 : i32
    return %arg0, %arg1 : i32, i32
  }
}

</mosaic_0001>

<llo_original>
// kernel: tpu_custom_call.1
$region0: #{tpu_custom_call.1}
  #allocation0 [shape = 'u32[]', space=smem, size = 0x4, offset = 0x4, fixed_abs, tag = 'smem constant byte address 0x4 - core index']
  #allocation1 [shape = 'u32[72,128]{1,0:T(1,128)}', space=vmem, size = 0x9000, scoped, tag = 'internal scratch']
  %s0 = inlined_call_operand.hbm [shape: s32[1,128], index: 0, kind: input, shape index: {}]
  %s1 = inlined_call_operand.hbm [shape: f32[8,48], index: 1, kind: input, shape index: {}]
  %s2 = inlined_call_operand.hbm [shape: f32[8,112], index: 2, kind: output, shape index: {}]
  %s3 = sld [smem:[#allocation0]]
  $region26: #{tpu_custom_call.1} parent=0
    _
  %s5 = ssub.s32 1, %s3
  %s6 = scalar_select 0, %s5, %s3
  $region1: #{tpu_custom_call.1} parent=0
    #allocation2 [shape = 'u8[512]{0}', space=vmem, size = 0x400, scoped, tag = 'input window, operand 0, single buffered']
    #allocation3 [shape = 's32[1]{0}', space=sflag, size = 0x4, scoped, tag = 'scoped memory for tpu_custom_call.1']
    #allocation4 [shape = 's32[1]{0}', space=sflag, size = 0x4, scoped, tag = 'scoped memory for tpu_custom_call.1']
    #allocation5 [shape = 'u8[4096]{0}', space=vmem, size = 0x1000, scoped, tag = 'input window, operand 1, single buffered']
    #allocation6 [shape = 's32[1]{0}', space=sflag, size = 0x4, scoped, tag = 'scoped memory for tpu_custom_call.1']
    #allocation7 [shape = 'u8[4096]{0}', space=vmem, size = 0x1000, scoped, tag = 'output window, operand 0, single buffered']
    %7 = vsyncpa [#allocation3], 0
    %8 = vsyncpa [#allocation6], 0
    %9 = vsyncpa [#allocation4], 0
    // Predicated region
    $region2: #{tpu_custom_call.1} parent=1 // pred_check
      _
    $region3: #{tpu_custom_call.1} parent=1 // pred_check_branch
      %11 = sbr.rel (0) target = $region5
    $region4: #{tpu_custom_call.1} parent=1 // pred_region
      %13 = vsyncadd [#allocation3], 0
      %s15 = sshll.u32 %s0, 4
      %s16 = int_to_ptr.hbm [resolvable:$true] %s15
      %s17 = sshll.u32 [#allocation2], 4
      %s18 = int_to_ptr.vmem [resolvable:$true] %s17
      %20 = dma.hbm_to_vmem [thread:$0]  %s16, 16, %s18, [#allocation3]
    $region5: #{tpu_custom_call.1} parent=1 // pred_fallthru
      _
    // Predicated region
    $region6: #{tpu_custom_call.1} parent=1 // pred_check
      _
    $region7: #{tpu_custom_call.1} parent=1 // pred_check_branch
      %22 = sbr.rel (0) target = $region9
    $region8: #{tpu_custom_call.1} parent=1 // pred_region
      %24 = vsyncadd [#allocation6], 0
      %s26 = sshll.u32 %s1, 4
      %s27 = int_to_ptr.hbm [resolvable:$true] %s26
      %s28 = sshll.u32 [#allocation5], 4
      %s29 = int_to_ptr.vmem [resolvable:$true] %s28
      %31 = dma.hbm_to_vmem [thread:$0]  %s27, 128, %s29, [#allocation6]
    $region9: #{tpu_custom_call.1} parent=1 // pred_fallthru
      _
    // Predicated region
    $region10: #{tpu_custom_call.1} parent=1 // pred_check
      _
    $region11: #{tpu_custom_call.1} parent=1 // pred_check_branch
      %33 = sbr.rel (0) target = $region13
    $region12: #{tpu_custom_call.1} parent=1 // pred_region
      %35 = dma.done [#allocation3], 16
    $region13: #{tpu_custom_call.1} parent=1 // pred_fallthru
      _
    // Predicated region
    $region14: #{tpu_custom_call.1} parent=1 // pred_check
      _
    $region15: #{tpu_custom_call.1} parent=1 // pred_check_branch
      %37 = sbr.rel (0) target = $region17
    $region16: #{tpu_custom_call.1} parent=1 // pred_region
      %39 = dma.done [#allocation6], 128
    $region17: #{tpu_custom_call.1} parent=1 // pred_fallthru
      _
    %v40 = vld [vmem:[#allocation5] sm:$0xff]
    %vm41 = vcmask 392192
    %v42 = vsel %vm41, %v40, 0.0
    %v43 = vld [vmem:[#allocation2] sm:$0x1]
    %v44 = vperm.slane %v43, 0
    %45 = vset.pattern.permute.xlu0 %v44
    %46 = vperm.xlu0 %45, %v42
    %v47 = vpop.permute.xlu0 %46
    %vm48 = vcmask 916480
    %49 = vst.msk [vmem:[#allocation7] sm:$0xff] %vm48, %v47
    // Predicated region
    $region18: #{tpu_custom_call.1} parent=1 // pred_check
      _
    $region19: #{tpu_custom_call.1} parent=1 // pred_check_branch
      %51 = sbr.rel (0) target = $region21
    $region20: #{tpu_custom_call.1} parent=1 // pred_region
      %53 = vsyncadd [#allocation4], 0
      %s55 = sshll.u32 [#allocation7], 4
      %s56 = int_to_ptr.vmem [resolvable:$true] %s55
      %s57 = sshll.u32 %s2, 4
      %s58 = int_to_ptr.hbm [resolvable:$true] %s57
      %60 = dma.vmem_to_hbm [thread:$0]  %s56, 128, %s58, [#allocation4]
    $region21: #{tpu_custom_call.1} parent=1 // pred_fallthru
      _
    // Predicated region
    $region22: #{tpu_custom_call.1} parent=1 // pred_check
      _
    $region23: #{tpu_custom_call.1} parent=1 // pred_check_branch
      %62 = sbr.rel (0) target = $region25
    $region24: #{tpu_custom_call.1} parent=1 // pred_region
      %64 = dma.done [#allocation4], 128
    $region25: #{tpu_custom_call.1} parent=1 // pred_fallthru
      _
    %65 = vsyncpa [#allocation3], 1
    %66 = vsyncpa [#allocation6], 1
    %67 = vsyncpa [#allocation4], 1

</llo_original>
